<compile_context>
chip_gen: v6e
topology: v6e:2x2x1
jax: 0.10.0
libtpu: 0.0.40
codegen_flags: <defaults>
</compile_context>

<pallas_src>
import functools

import jax
import jax.numpy as jnp
from jax.experimental import pallas as pl
from jax.experimental.pallas import tpu as pltpu


def _spread_loss_kernel(y_ref, lbl_ref, m_ref, out_ref, acc_ref,
                        *, batch, tb, nbc):
    c = pl.program_id(0)          # core split (v7x dual TC; sequential on 1 TC)
    i = pl.program_id(1)          # row-tile index within this core's range
    tile = c * nbc + i            # logical (unclamped) tile id

    @pl.when(i == 0)
    def _():
        acc_ref[...] = jnp.zeros_like(acc_ref)

    y = y_ref[...].astype(jnp.float32)          # (tb, C): rows=samples, lanes=classes
    lbl = lbl_ref[...]                          # (tb, 1) int32
    m = m_ref[0]                                # scalar margin (SMEM)

    num_class = y.shape[1]
    class_ids = jax.lax.broadcasted_iota(jnp.int32, (tb, num_class), 1)

    # a_t: activation of the true class per sample (select + small lane reduce).
    a_t = jnp.sum(jnp.where(class_ids == lbl, y, 0.0), axis=1, keepdims=True)

    # (1 - onehot) algebraically eliminated: the true-class term contributes
    # relu(m)^2, which is subtracted once per *valid* sample below.
    # NOTE: labels outside [0, C) would diverge from the torch reference by m^2
    # per such sample (documented, matches previous behaviour).
    margins = jnp.maximum(y - a_t + m, 0.0)     # (tb, C)
    sq = margins * margins

    # Validity mask for ragged last tile / phantom tiles. jnp.where (not *0) so
    # unspecified data in partial edge blocks (possibly Inf/NaN) is dropped.
    row = jax.lax.broadcasted_iota(jnp.int32, (tb, num_class), 0)
    valid = (tile * tb + row) < batch
    contrib = jnp.where(valid, sq, 0.0)

    tile_sum = jnp.sum(jnp.sum(contrib, axis=0, keepdims=True),
                       axis=1, keepdims=True)   # (1, 1)

    # Number of valid samples in this tile (pure scalar arithmetic).
    n_valid = jnp.minimum(jnp.maximum(batch - tile * tb, 0), tb).astype(jnp.float32)
    m_sq = jnp.maximum(m, 0.0) ** 2             # relu(m)^2, robust to m <= 0

    acc_ref[...] += tile_sum - n_valid * m_sq

    @pl.when(i == nbc - 1)
    def _():
        out_ref[...] = jnp.broadcast_to(acc_ref[...] / jnp.float32(batch),
                                        out_ref.shape)


def spread_loss(y_hat, labels, m=0.2, tb=8192):
    """y_hat: (B, C) float32/bfloat16 (row-major, unmodified), labels: (B,) int.

    Returns the scalar spread loss (mean over the batch).
    """
    B, C = y_hat.shape

    # Row tile: multiple of 8 sublanes, clamped to the (8-padded) batch.
    b_pad8 = pl.cdiv(B, 8) * 8
    tb = max(8, (tb // 8) * 8)
    tb = min(tb, b_pad8)
    nb = pl.cdiv(B, tb)

    # Dual-TensorCore split (v7x); harmless sequential loop on 1-TC chips.
    nsplit = 2 if nb > 1 else 1
    nbc = pl.cdiv(nb, nsplit)

    labels_col = labels.reshape(B, 1).astype(jnp.int32)
    m_arr = jnp.asarray(m, dtype=jnp.float32).reshape(1)

    kernel = functools.partial(_spread_loss_kernel, batch=B, tb=tb, nbc=nbc)

    def row_map(c, i):
        # Clamp phantom tiles (odd tile count split across 2 cores) so the DMA
        # stays in-bounds; their contribution is masked to zero in-kernel.
        return (jnp.minimum(c * nbc + i, nb - 1), 0)

    cost = pl.CostEstimate(
        flops=8 * B * C,
        transcendentals=0,
        bytes_accessed=B * (C * y_hat.dtype.itemsize + 4) + 4 + 512 * nsplit,
    )

    out = pl.pallas_call(
        kernel,
        out_shape=jax.ShapeDtypeStruct((1, 128 * nsplit), jnp.float32),
        grid=(nsplit, nbc),
        in_specs=[
            pl.BlockSpec((tb, C), row_map),            # y_hat row tile (no transpose/pad)
            pl.BlockSpec((tb, 1), row_map),            # labels row tile
            pl.BlockSpec(memory_space=pltpu.SMEM),     # margin scalar
        ],
        out_specs=pl.BlockSpec((1, 128), lambda c, i: (0, c)),   # lane-dense per-core partial
        scratch_shapes=[pltpu.VMEM((1, 1), jnp.float32)],
        compiler_params=pltpu.CompilerParams(
            dimension_semantics=("parallel", "arbitrary"),
            vmem_limit_bytes=32 * 1024 * 1024,
        ),
        cost_estimate=cost,
    )(y_hat, labels_col, m_arr)

    # Each core broadcast its partial across its 128-lane output block.
    return jnp.sum(out[0, ::128])


def spread_loss_ref(y_hat, labels, m=0.2):
    """Pure-JAX reference mirroring the PyTorch forward."""
    C = y_hat.shape[1]
    onehot = jax.nn.one_hot(labels, C, dtype=jnp.float32)
    y = y_hat.astype(jnp.float32)
    a_t = jnp.sum(onehot * y, axis=1)
    margins = (m - (a_t[:, None] - y)) * (1.0 - onehot)
    loss = jnp.sum(jnp.maximum(margins, 0.0) ** 2, axis=1)
    return jnp.mean(loss)


if __name__ == "__main__":
    key = jax.random.PRNGKey(0)
    k1, k2 = jax.random.split(key)

    NUM_CLASS = 10
    B = 300  # not a multiple of the tile -> exercises ragged tail
    y_hat = jax.random.uniform(k1, (B, NUM_CLASS), dtype=jnp.float32)
    labels = jax.random.randint(k2, (B,), 0, NUM_CLASS, dtype=jnp.int32)

    ref = spread_loss_ref(y_hat, labels, m=0.2)

    # Multi-tile path: tb=128 -> 3 row tiles, grid (2, 2) with dual-core split,
    # one ragged edge tile and one fully masked phantom tile.
    out = jax.block_until_ready(spread_loss(y_hat, labels, m=0.2, tb=128))
    assert jnp.allclose(out, ref, atol=1e-5, rtol=1e-5), (out, ref)

    # Single-tile default path (tb clamps to round_up(B, 8)).
    out1 = jax.block_until_ready(spread_loss(y_hat, labels, m=0.2))
    assert jnp.allclose(out1, ref, atol=1e-5, rtol=1e-5), (out1, ref)

    # bf16 activations (halves the dominant HBM read); kernel upcasts to f32.
    y_bf16 = y_hat.astype(jnp.bfloat16)
    out_bf = jax.block_until_ready(spread_loss(y_bf16, labels, m=0.2))
    ref_bf = spread_loss_ref(y_bf16, labels, m=0.2)
    assert jnp.allclose(out_bf, ref_bf, atol=1e-4, rtol=1e-4), (out_bf, ref_bf)

    # Tiny ragged batch (B=5 < 8 sublanes -> single partial block).
    yh5, lb5 = y_hat[:5], labels[:5]
    out5 = jax.block_until_ready(spread_loss(yh5, lb5, m=0.2))
    ref5 = spread_loss_ref(yh5, lb5, m=0.2)
    assert jnp.allclose(out5, ref5, atol=1e-5, rtol=1e-5), (out5, ref5)

    print("KERNEL_OK")
</pallas_src>

<mosaic_0001>
module attributes {stable_mosaic.version = 11 : i64} {
  func.func @_spread_loss_kernel(%arg0: i32, %arg1: i32, %arg2: memref<128x10xf32, #tpu.memory_space<vmem>>, %arg3: memref<128x1xi32, #tpu.memory_space<vmem>>, %arg4: memref<1xf32, #tpu.memory_space<smem>>, %arg5: memref<1x128xf32, #tpu.memory_space<vmem>>, %arg6: memref<1x1xf32, #tpu.memory_space<vmem>>) attributes {dimension_semantics = [#tpu.dimension_semantics<parallel>, #tpu.dimension_semantics<arbitrary>], iteration_bounds = array<i64: 2, 2>, scalar_prefetch = 0 : i64, scratch_operands = 1 : i64, tpu.core_type = #tpu.core_type<tc>, window_params = [{transform_indices = @transform_0, window_bounds = array<i64: 128, 10>}, {transform_indices = @transform_1, window_bounds = array<i64: 128, 1>}, {transform_indices = @transform_2, window_bounds = array<i64: 1>}, {transform_indices = @transform_3, window_bounds = array<i64: 1, 128>}]} {
    %c2_i32 = arith.constant 2 : i32
    %0 = arith.muli %arg0, %c2_i32 : i32
    %1 = arith.addi %0, %arg1 : i32
    %c0_i32 = arith.constant 0 : i32
    %2 = arith.cmpi eq, %arg1, %c0_i32 : i32
    %3 = arith.extui %2 : i1 to i32
    %c0_i32_0 = arith.constant 0 : i32
    %4 = arith.cmpi ne, %3, %c0_i32_0 : i32
    scf.if %4 {
      %cst_20 = arith.constant 0.000000e+00 : f32
      %50 = vector.broadcast %cst_20 : f32 to vector<1x1xf32>
      %c0_21 = arith.constant 0 : index
      %c0_22 = arith.constant 0 : index
      %51 = vector.load %arg6[%c0_21, %c0_22] : memref<1x1xf32, #tpu.memory_space<vmem>>, vector<1x1xf32>
      tpu.vector_store %arg6[%c0_21, %c0_22], %50 {strides = array<i32>} : memref<1x1xf32, #tpu.memory_space<vmem>>, vector<1x1xf32>,
    } else {
    }
    %c0 = arith.constant 0 : index
    %c0_1 = arith.constant 0 : index
    %5 = vector.load %arg2[%c0, %c0_1] : memref<128x10xf32, #tpu.memory_space<vmem>>, vector<128x10xf32>
    %c0_2 = arith.constant 0 : index
    %c0_3 = arith.constant 0 : index
    %6 = vector.load %arg3[%c0_2, %c0_3] : memref<128x1xi32, #tpu.memory_space<vmem>>, vector<128x1xi32>
    %c0_4 = arith.constant 0 : index
    %7 = memref.load %arg4[%c0_4] : memref<1xf32, #tpu.memory_space<smem>>
    %8 = tpu.iota {dimensions = array<i32: 1>} : vector<128x10xi32>
    %9 = vector.broadcast %6 : vector<128x1xi32> to vector<128x10xi32>
    %10 = arith.cmpi eq, %8, %9 : vector<128x10xi32>
    %cst = arith.constant 0.000000e+00 : f32
    %11 = vector.broadcast %cst : f32 to vector<128x10xf32>
    %12 = arith.select %10, %5, %11 : vector<128x10xi1>, vector<128x10xf32>
    %cst_5 = arith.constant dense<0.000000e+00> : vector<128xf32>
    %13 = vector.multi_reduction <add>, %12, %cst_5 [1] : vector<128x10xf32> to vector<128xf32>
    %14 = vector.shape_cast %13 : vector<128xf32> to vector<128x1xf32>
    %15 = vector.broadcast %14 : vector<128x1xf32> to vector<128x10xf32>
    %16 = arith.subf %5, %15 : vector<128x10xf32>
    %17 = vector.broadcast %7 : f32 to vector<128x10xf32>
    %18 = arith.addf %16, %17 : vector<128x10xf32>
    %cst_6 = arith.constant 0.000000e+00 : f32
    %19 = vector.broadcast %cst_6 : f32 to vector<128x10xf32>
    %20 = arith.maximumf %18, %19 : vector<128x10xf32>
    %21 = arith.mulf %20, %20 : vector<128x10xf32>
    %22 = tpu.iota {dimensions = array<i32: 0>} : vector<128x10xi32>
    %c128_i32 = arith.constant 128 : i32
    %23 = arith.muli %1, %c128_i32 : i32
    %24 = vector.broadcast %23 : i32 to vector<128x10xi32>
    %25 = arith.addi %24, %22 : vector<128x10xi32>
    %c300_i32 = arith.constant 300 : i32
    %26 = vector.broadcast %c300_i32 : i32 to vector<128x10xi32>
    %27 = arith.cmpi slt, %25, %26 : vector<128x10xi32>
    %cst_7 = arith.constant 0.000000e+00 : f32
    %28 = vector.broadcast %cst_7 : f32 to vector<128x10xf32>
    %29 = arith.select %27, %21, %28 : vector<128x10xi1>, vector<128x10xf32>
    %cst_8 = arith.constant dense<0.000000e+00> : vector<10xf32>
    %30 = vector.multi_reduction <add>, %29, %cst_8 [0] : vector<128x10xf32> to vector<10xf32>
    %31 = vector.shape_cast %30 : vector<10xf32> to vector<1x10xf32>
    %cst_9 = arith.constant dense<0.000000e+00> : vector<1xf32>
    %32 = vector.multi_reduction <add>, %31, %cst_9 [1] : vector<1x10xf32> to vector<1xf32>
    %33 = vector.shape_cast %32 : vector<1xf32> to vector<1x1xf32>
    %c128_i32_10 = arith.constant 128 : i32
    %34 = arith.muli %1, %c128_i32_10 : i32
    %c300_i32_11 = arith.constant 300 : i32
    %35 = arith.subi %c300_i32_11, %34 : i32
    %c0_i32_12 = arith.constant 0 : i32
    %36 = arith.maxsi %35, %c0_i32_12 : i32
    %c128_i32_13 = arith.constant 128 : i32
    %37 = arith.minsi %36, %c128_i32_13 : i32
    %38 = arith.sitofp %37 : i32 to f32
    %cst_14 = arith.constant 0.000000e+00 : f32
    %39 = arith.maximumf %7, %cst_14 : f32
    %40 = arith.mulf %39, %39 : f32
    %c0_15 = arith.constant 0 : index
    %c0_16 = arith.constant 0 : index
    %41 = vector.load %arg6[%c0_15, %c0_16] : memref<1x1xf32, #tpu.memory_space<vmem>>, vector<1x1xf32>
    %42 = arith.mulf %38, %40 : f32
    %43 = vector.broadcast %42 : f32 to vector<1x1xf32>
    %44 = arith.subf %33, %43 : vector<1x1xf32>
    %45 = arith.addf %41, %44 : vector<1x1xf32>
    %c0_17 = arith.constant 0 : index
    %c0_18 = arith.constant 0 : index
    %46 = vector.load %arg6[%c0_17, %c0_18] : memref<1x1xf32, #tpu.memory_space<vmem>>, vector<1x1xf32>
    tpu.vector_store %arg6[%c0_17, %c0_18], %45 {strides = array<i32>} : memref<1x1xf32, #tpu.memory_space<vmem>>, vector<1x1xf32>,
    %c1_i32 = arith.constant 1 : i32
    %47 = arith.cmpi eq, %arg1, %c1_i32 : i32
    %48 = arith.extui %47 : i1 to i32
    %c0_i32_19 = arith.constant 0 : i32
    %49 = arith.cmpi ne, %48, %c0_i32_19 : i32
    scf.if %49 {
      %c0_20 = arith.constant 0 : index
      %c0_21 = arith.constant 0 : index
      %50 = vector.load %arg6[%c0_20, %c0_21] : memref<1x1xf32, #tpu.memory_space<vmem>>, vector<1x1xf32>
      %cst_22 = arith.constant 3.000000e+02 : f32
      %51 = vector.broadcast %cst_22 : f32 to vector<1x1xf32>
      %52 = arith.divf %50, %51 : vector<1x1xf32>
      %53 = vector.shape_cast %52 : vector<1x1xf32> to vector<1x1xf32>
      %54 = vector.broadcast %53 : vector<1x1xf32> to vector<1x128xf32>
      %c0_23 = arith.constant 0 : index
      %c0_24 = arith.constant 0 : index
      %55 = vector.load %arg5[%c0_23, %c0_24] : memref<1x128xf32, #tpu.memory_space<vmem>>, vector<1x128xf32>
      tpu.vector_store %arg5[%c0_23, %c0_24], %54 {strides = array<i32>} : memref<1x128xf32, #tpu.memory_space<vmem>>, vector<1x128xf32>,
    } else {
    }
    return
  }
  func.func @transform_0(%arg0: i32, %arg1: i32) -> (i32, i32) {
    %c2_i32 = arith.constant 2 : i32
    %0 = arith.muli %arg0, %c2_i32 : i32
    %1 = arith.addi %0, %arg1 : i32
    %c2_i32_0 = arith.constant 2 : i32
    %2 = arith.minsi %1, %c2_i32_0 : i32
    %c0_i32 = arith.constant 0 : i32
    %c0_i32_1 = arith.constant 0 : i32
    return %2, %c0_i32 : i32, i32
  }
  func.func @transform_1(%arg0: i32, %arg1: i32) -> (i32, i32) {
    %c2_i32 = arith.constant 2 : i32
    %0 = arith.muli %arg0, %c2_i32 : i32
    %1 = arith.addi %0, %arg1 : i32
    %c2_i32_0 = arith.constant 2 : i32
    %2 = arith.minsi %1, %c2_i32_0 : i32
    %c0_i32 = arith.constant 0 : i32
    %c0_i32_1 = arith.constant 0 : i32
    return %2, %c0_i32 : i32, i32
  }
  func.func @transform_2(%arg0: i32, %arg1: i32) -> i32 {
    %c0_i32 = arith.constant 0 : i32
    %c0_i32_0 = arith.constant 0 : i32
    return %c0_i32 : i32
  }
  func.func @transform_3(%arg0: i32, %arg1: i32) -> (i32, i32) {
    %c0_i32 = arith.constant 0 : i32
    %c0_i32_0 = arith.constant 0 : i32
    return %c0_i32, %arg0 : i32, i32
  }
}

</mosaic_0001>

<llo_original>
// kernel: tpu_custom_call.1
$region0: #{tpu_custom_call.1}
  #allocation0 [shape = 'u32[]', space=smem, size = 0x4, offset = 0x4, fixed_abs, tag = 'smem constant byte address 0x4 - core index']
  #allocation1 [shape = 'u32[144,128]{1,0:T(1,128)}', space=vmem, size = 0x12000, scoped, tag = 'internal scratch']
  #allocation2 [shape = 'f32[1,1]{1,0:T(1,128)}', space=vmem, size = 0x200, scoped, tag = 'scratch operand']
  #allocation3 [shape = 'f32[1]{0:T(128)S(6)}', space=smem, size = 0x200, scoped, tag = 'scoped memory for tpu_custom_call.1']
  %s0 = inlined_call_operand.vmem [shape: f32[300,10], index: 0, kind: input, shape index: {}]
  %s1 = inlined_call_operand.vmem [shape: s32[300,1], index: 1, kind: input, shape index: {}]
  %s2 = inlined_call_operand.<no memory space> [shape: f32[1], index: 2, kind: input, shape index: {}]
  %s3 = inlined_call_operand.hbm [shape: f32[1,256], index: 3, kind: output, shape index: {}]
  %s4 = sld [smem:[#allocation0]]
  $region53: #{tpu_custom_call.1} parent=0
    _
  %s6 = ssub.s32 1, %s4
  %s7 = scalar_select 0, %s6, %s4
  %8 = sst [smem:[#allocation3]] %s2
  $region1: #{tpu_custom_call.1} parent=0
    #allocation4 [shape = 'u8[1024]{0}', space=vmem, size = 0x400, scoped, tag = 'output window, operand 0']
    #allocation5 [shape = 's32[2]{0}', space=sflag, size = 0x8, scoped, tag = 'scoped memory for tpu_custom_call.1']
    %9 = vsyncpa [#allocation5], 0
    %s10 = scalar_lea.sflag [#allocation5], 1
    %11 = vsyncpa %s10, 0
    loop: start=0, step=1, limit=6
    $region2: #{tpu_custom_call.1} parent=1 // loop_pre_header
      _
    $region3: #{tpu_custom_call.1} parent=1 // loop_header
      %s13 = sphi 0, %s17
      %p14 = scmp.ge.s32.totalorder %s13, 6
      %s20 = sphi 0, %s32
      %s21 = sphi 0, %s28
      %s22 = sphi 0, %s20
      %s23 = sphi 0, %s21
      %s24 = sphi 0, %s22
      %s25 = sphi 0, %s23
      %s43 = sphi 0, %s45
      %s46 = sphi 0, %s43
      %s47 = sphi 0, %s46
      %s63 = sphi 0, %s47
      %s77 = sphi 0, %s79
      %s80 = sphi 0, %s77
      %s81 = sphi 0, %s80
      %s97 = sphi 0, %s81
      %s101 = sphi 0, %s101
      %s103 = sphi 0, %s101
      %s104 = sphi 0, %s103
      %s118 = sphi 0, %s104
      %s124 = sphi 0, %s126
      %s127 = sphi 0, %s124
      %s128 = sphi 0, %s127
      %s144 = sphi 0, %s128
    $region4: #{tpu_custom_call.1} parent=1 // loop_header_branch
      %16 = sbr.rel (%p14) target = $region8
    $region5: #{tpu_custom_call.1} parent=1 // loop_body
      %s18 = ssub.s32 %s13, 1
      %s19 = ssub.s32 %s13, 2
      %s26 = sadd.s32 1, %s21
      %p27 = scmp.ge.s32.totalorder %s26, 2
      %s28 = scalar_select %p27, 0, %s26
      %s29 = sadd.s32 1, %s20
      %s30 = scalar_select %p27, %s29, %s20
      %p31 = scmp.ge.s32.totalorder %s30, 2
      %s32 = scalar_select %p31, 0, %s30
      %s33 = smul.u32 %s20, 2
      %s34 = sadd.s32 %s33, %s21
      %p35 = scmp.lt.s32.totalorder %s34, 2
      %s36 = scalar_select %p35, %s34, 2
      %s37 = smul.u32 %s32, 2
      %s38 = sadd.s32 %s37, %s28
      %p39 = scmp.lt.s32.totalorder %s38, 2
      %s40 = scalar_select %p39, %s38, 2
      %s41 = ssub.s32 %s36, %s40
      %p42 = scmp.eq.s32.totalorder %s41, 0
      %s44 = sadd.s32 %s43, 1
      %s45 = scalar_select %p42, %s43, %s44
      %p48 = pneg %p42
      %p49 = scmp.eq.s32.totalorder %s13, 3
      %p50 = por %p48, %p49
      %p51 = scmp.ne.s32.totalorder %s43, %s46
      %p52 = scmp.eq.s32.totalorder %s13, 0
      %p53 = por %p51, %p52
      %p54 = scmp.ne.s32.totalorder %s43, %s46
      %p55 = scmp.eq.s32.totalorder %s18, 3
      %p56 = por %p54, %p55
      %p57 = scmp.ne.s32.totalorder %s46, %s47
      %p58 = scmp.eq.s32.totalorder %s18, 0
      %p59 = por %p57, %p58
      %p60 = scmp.ne.s32.totalorder %s46, %s47
      %p61 = scmp.eq.s32.totalorder %s19, 3
      %p62 = por %p60, %p61
      %p64 = scmp.ne.s32.totalorder %s47, %s63
      %p65 = scmp.eq.s32.totalorder %s19, 0
      %p66 = por %p64, %p65
      %s67 = smul.u32 %s20, 2
      %s68 = sadd.s32 %s67, %s21
      %p69 = scmp.lt.s32.totalorder %s68, 2
      %s70 = scalar_select %p69, %s68, 2
      %s71 = smul.u32 %s32, 2
      %s72 = sadd.s32 %s71, %s28
      %p73 = scmp.lt.s32.totalorder %s72, 2
      %s74 = scalar_select %p73, %s72, 2
      %s75 = ssub.s32 %s70, %s74
      %p76 = scmp.eq.s32.totalorder %s75, 0
      %s78 = sadd.s32 %s77, 1
      %s79 = scalar_select %p76, %s77, %s78
      %p82 = pneg %p76
      %p83 = scmp.eq.s32.totalorder %s13, 3
      %p84 = por %p82, %p83
      %p85 = scmp.ne.s32.totalorder %s77, %s80
      %p86 = scmp.eq.s32.totalorder %s13, 0
      %p87 = por %p85, %p86
      %p88 = scmp.ne.s32.totalorder %s77, %s80
      %p89 = scmp.eq.s32.totalorder %s18, 3
      %p90 = por %p88, %p89
      %p91 = scmp.ne.s32.totalorder %s80, %s81
      %p92 = scmp.eq.s32.totalorder %s18, 0
      %p93 = por %p91, %p92
      %p94 = scmp.ne.s32.totalorder %s80, %s81
      %p95 = scmp.eq.s32.totalorder %s19, 3
      %p96 = por %p94, %p95
      %p98 = scmp.ne.s32.totalorder %s81, %s97
      %p99 = scmp.eq.s32.totalorder %s19, 0
      %p100 = por %p98, %p99
      %s102 = sadd.s32 %s101, 1
      %p105 = scmp.eq.s32.totalorder %s13, 3
      %p106 = scmp.ne.s32.totalorder %s101, %s103
      %p107 = scmp.eq.s32.totalorder %s13, 0
      %p108 = por %p106, %p107
      %p109 = scmp.ne.s32.totalorder %s101, %s103
      %p110 = scmp.eq.s32.totalorder %s18, 3
      %p111 = por %p109, %p110
      %p112 = scmp.ne.s32.totalorder %s103, %s104
      %p113 = scmp.eq.s32.totalorder %s18, 0
      %p114 = por %p112, %p113
      %p115 = scmp.ne.s32.totalorder %s103, %s104
      %p116 = scmp.eq.s32.totalorder %s19, 3
      %p117 = por %p115, %p116
      %p119 = scmp.ne.s32.totalorder %s104, %s118
      %p120 = scmp.eq.s32.totalorder %s19, 0
      %p121 = por %p119, %p120
      %s122 = ssub.s32 %s20, %s32
      %p123 = scmp.eq.s32.totalorder %s122, 0
      %s125 = sadd.s32 %s124, 1
      %s126 = scalar_select %p123, %s124, %s125
      %p129 = pneg %p123
      %p130 = scmp.eq.s32.totalorder %s13, 3
      %p131 = por %p129, %p130
      %p132 = scmp.ne.s32.totalorder %s124, %s127
      %p133 = scmp.eq.s32.totalorder %s13, 0
      %p134 = por %p132, %p133
      %p135 = scmp.ne.s32.totalorder %s124, %s127
      %p136 = scmp.eq.s32.totalorder %s18, 3
      %p137 = por %p135, %p136
      %p138 = scmp.ne.s32.totalorder %s127, %s128
      %p139 = scmp.eq.s32.totalorder %s18, 0
      %p140 = por %p138, %p139
      %p141 = scmp.ne.s32.totalorder %s127, %s128
      %p142 = scmp.eq.s32.totalorder %s19, 3
      %p143 = por %p141, %p142
      %p145 = scmp.ne.s32.totalorder %s128, %s144
      %p146 = scmp.eq.s32.totalorder %s19, 0
      %p147 = por %p145, %p146
      %p148 = scmp.le.s32.totalorder 1, %s13
      %p149 = scmp.lt.s32.totalorder %s13, 5
      %p150 = pnand %p148, %p149
      %p151 = pneg %p150
      // Predicated region
      $region9: #{tpu_custom_call.1} parent=5 // pred_check
        _
      $region10: #{tpu_custom_call.1} parent=5 // pred_check_branch
        %153 = sbr.rel (%p150) target = $region12
      $region11: #{tpu_custom_call.1} parent=5 // pred_region
        %s154 = ssub.s32 %s13, 1
        // Predicated region
        $region13: #{tpu_custom_call.1} parent=11 // pred_check
          %p155 = pneg %p114
        $region14: #{tpu_custom_call.1} parent=11 // pred_check_branch
          %157 = sbr.rel (%p155) target = $region16
        $region15: #{tpu_custom_call.1} parent=11 // pred_region
          _
        $region16: #{tpu_custom_call.1} parent=11 // pred_fallthru
          _
      $region12: #{tpu_custom_call.1} parent=5 // pred_fallthru
        _
      %p158 = scmp.lt.s32.totalorder %s13, 4
      // Predicated region
      $region17: #{tpu_custom_call.1} parent=5 // pred_check
        %p159 = pneg %p158
      $region18: #{tpu_custom_call.1} parent=5 // pred_check_branch
        %161 = sbr.rel (%p159) target = $region20
      $region19: #{tpu_custom_call.1} parent=5 // pred_region
        // Predicated region
        $region21: #{tpu_custom_call.1} parent=19 // pred_check
          %p162 = pneg %p53
        $region22: #{tpu_custom_call.1} parent=19 // pred_check_branch
          %164 = sbr.rel (%p162) target = $region24
        $region23: #{tpu_custom_call.1} parent=19 // pred_region
          %s165 = smul.u32 %s20, 2
          %s166 = sadd.s32 %s165, %s21
          %p167 = scmp.lt.s32.totalorder %s166, 2
          %s168 = scalar_select %p167, %s166, 2
          %s169 = smul.u32 16, %s168
          %s170 = ssub.s32 38, %s169
          %p171 = scmp.lt.s32.totalorder %s170, 16
          %s172 = scalar_select %p171, %s170, 16
          %s173 = smul.u32 128, %s172
          %p174 = scmp.lt.s32.totalorder %s169, 37
          %s175 = scalar_select %p174, %s169, 37
          %s176 = smul.addr %s175, 8
          %s177 = scalar_lea.vmem %s0, %s176
          %s178 = smul.u32 %s20, 2
          %s179 = sadd.s32 %s178, %s21
          %p180 = scmp.lt.s32.totalorder %s179, 2
          %s181 = scalar_select %p180, %s179, 2
          %s182 = smul.u32 16, %s181
          %s183 = ssub.s32 38, %s182
          %p184 = scmp.lt.s32.totalorder %s183, 16
          %s185 = scalar_select %p184, %s183, 16
          %s186 = smul.u32 128, %s185
        $region24: #{tpu_custom_call.1} parent=19 // pred_fallthru
          _
        // Predicated region
        $region25: #{tpu_custom_call.1} parent=19 // pred_check
          %p187 = pneg %p87
        $region26: #{tpu_custom_call.1} parent=19 // pred_check_branch
          %189 = sbr.rel (%p187) target = $region28
        $region27: #{tpu_custom_call.1} parent=19 // pred_region
          %s190 = smul.u32 %s20, 2
          %s191 = sadd.s32 %s190, %s21
          %p192 = scmp.lt.s32.totalorder %s191, 2
          %s193 = scalar_select %p192, %s191, 2
          %s194 = smul.u32 16, %s193
          %s195 = ssub.s32 38, %s194
          %p196 = scmp.lt.s32.totalorder %s195, 16
          %s197 = scalar_select %p196, %s195, 16
          %s198 = smul.u32 128, %s197
          %p199 = scmp.lt.s32.totalorder %s194, 37
          %s200 = scalar_select %p199, %s194, 37
          %s201 = smul.addr %s200, 8
          %s202 = scalar_lea.vmem %s1, %s201
          %s203 = smul.u32 %s20, 2
          %s204 = sadd.s32 %s203, %s21
          %p205 = scmp.lt.s32.totalorder %s204, 2
          %s206 = scalar_select %p205, %s204, 2
          %s207 = smul.u32 16, %s206
          %s208 = ssub.s32 38, %s207
          %p209 = scmp.lt.s32.totalorder %s208, 16
          %s210 = scalar_select %p209, %s208, 16
          %s211 = smul.u32 128, %s210
        $region28: #{tpu_custom_call.1} parent=19 // pred_fallthru
          _
      $region20: #{tpu_custom_call.1} parent=5 // pred_fallthru
        _
      %p212 = scmp.le.s32.totalorder 1, %s13
      %p213 = scmp.lt.s32.totalorder %s13, 5
      %p214 = pnand %p212, %p213
      %p215 = pneg %p214
      // Predicated region
      $region29: #{tpu_custom_call.1} parent=5 // pred_check
        _
      $region30: #{tpu_custom_call.1} parent=5 // pred_check_branch
        %217 = sbr.rel (%p214) target = $region32
      $region31: #{tpu_custom_call.1} parent=5 // pred_region
        %s218 = ssub.s32 %s13, 1
        %s219 = smul.u32 %s22, 2
        %s220 = sadd.s32 %s219, %s23
        %p221 = scmp.lt.s32.totalorder %s220, 2
        %s222 = scalar_select %p221, %s220, 2
        %s223 = smul.u32 16, %s222
        %s224 = ssub.s32 38, %s223
        %p225 = scmp.lt.s32.totalorder %s224, 16
        %s226 = scalar_select %p225, %s224, 16
        %s227 = smul.u32 128, %s226
        %p228 = scmp.lt.s32.totalorder %s223, 37
        %s229 = scalar_select %p228, %s223, 37
        %s230 = smul.addr %s229, 8
        %s231 = scalar_lea.vmem %s0, %s230
        %p232 = pneg %p59
        %p233 = pneg %p56
        %s234 = smul.u32 %s22, 2
        %s235 = sadd.s32 %s234, %s23
        %p236 = scmp.lt.s32.totalorder %s235, 2
        %s237 = scalar_select %p236, %s235, 2
        %s238 = smul.u32 16, %s237
        %s239 = ssub.s32 38, %s238
        %p240 = scmp.lt.s32.totalorder %s239, 16
        %s241 = scalar_select %p240, %s239, 16
        %s242 = smul.u32 128, %s241
        %p243 = scmp.lt.s32.totalorder %s238, 37
        %s244 = scalar_select %p243, %s238, 37
        %s245 = smul.addr %s244, 8
        %s246 = scalar_lea.vmem %s1, %s245
        %p247 = pneg %p93
        %p248 = pneg %p90
        %p249 = pneg %p114
        %p250 = pneg %p111
        %p251 = pneg %p140
        %p252 = pneg %p137
        %s253 = sand.u32 %s127, 1
        %s254 = scalar_lea.sflag [#allocation5], %s253
        %s255 = sand.u32 %s127, 1
        %s256 = scalar_lea.vmem [#allocation4], %s255
        %s257 = smul.u32 %s22, 2
        %s258 = sadd.s32 %s257, %s23
        %p259 = scmp.lt.s32.totalorder %s258, 2
        %s260 = scalar_select %p259, %s258, 2
        %s261 = smul.u32 16, %s260
        %s262 = ssub.s32 38, %s261
        %p263 = scmp.lt.s32.totalorder %s262, 16
        %s264 = scalar_select %p263, %s262, 16
        %s265 = smul.u32 128, %s264
        %p266 = scmp.lt.s32.totalorder %s261, 37
        %s267 = scalar_select %p266, %s261, 37
        %s268 = smul.addr %s267, 8
        %s269 = scalar_lea.vmem %s0, %s268
        %s270 = smul.u32 %s22, 2
        %s271 = sadd.s32 %s270, %s23
        %p272 = scmp.lt.s32.totalorder %s271, 2
        %s273 = scalar_select %p272, %s271, 2
        %s274 = smul.u32 16, %s273
        %s275 = ssub.s32 38, %s274
        %p276 = scmp.lt.s32.totalorder %s275, 16
        %s277 = scalar_select %p276, %s275, 16
        %s278 = smul.u32 128, %s277
        %s279 = smul.u32 %s22, 2
        %s280 = sadd.s32 %s279, %s23
        %p281 = scmp.lt.s32.totalorder %s280, 2
        %s282 = scalar_select %p281, %s280, 2
        %s283 = smul.u32 16, %s282
        %s284 = ssub.s32 38, %s283
        %p285 = scmp.lt.s32.totalorder %s284, 16
        %s286 = scalar_select %p285, %s284, 16
        %s287 = smul.u32 128, %s286
        %p288 = scmp.lt.s32.totalorder %s283, 37
        %s289 = scalar_select %p288, %s283, 37
        %s290 = smul.addr %s289, 8
        %s291 = scalar_lea.vmem %s1, %s290
        %s292 = smul.u32 %s22, 2
        %s293 = sadd.s32 %s292, %s23
        %p294 = scmp.lt.s32.totalorder %s293, 2
        %s295 = scalar_select %p294, %s293, 2
        %s296 = smul.u32 16, %s295
        %s297 = ssub.s32 38, %s296
        %p298 = scmp.lt.s32.totalorder %s297, 16
        %s299 = scalar_select %p298, %s297, 16
        %s300 = smul.u32 128, %s299
        %s301 = smul.u32 %s22, 2
        %s302 = sadd.s32 %s301, %s23
        %p303 = scmp.eq.s32.totalorder %s23, 0
        // Predicated region
        $region33: #{tpu_custom_call.1} parent=31 // pred_check
          %p304 = pneg %p303
        $region34: #{tpu_custom_call.1} parent=31 // pred_check_branch
          %306 = sbr.rel (%p304) target = $region36
        $region35: #{tpu_custom_call.1} parent=31 // pred_region
          %vm307 = vcmask 0
          %308 = vst.msk [vmem:[#allocation2] sm:$0x1] %vm307, 0.0
        $region36: #{tpu_custom_call.1} parent=31 // pred_fallthru
          _
        %v309 = vld [vmem:[%s269] sm:$0xff]
        %v310 = vld [vmem:[%s269 + $0x8] sm:$0xff]
        %v311 = vld [vmem:[%s269 + $0x10] sm:$0xff]
        %v312 = vld [vmem:[%s269 + $0x18] sm:$0xff]
        %v313 = vld [vmem:[%s269 + $0x20] sm:$0xff]
        %v314 = vld [vmem:[%s269 + $0x28] sm:$0xff]
        %v315 = vld [vmem:[%s269 + $0x30] sm:$0xff]
        %v316 = vld [vmem:[%s269 + $0x38] sm:$0xff]
        %v317 = vld [vmem:[%s269 + $0x40] sm:$0xff]
        %v318 = vld [vmem:[%s269 + $0x48] sm:$0xff]
        %v319 = vld [vmem:[%s269 + $0x50] sm:$0xff]
        %v320 = vld [vmem:[%s269 + $0x58] sm:$0xff]
        %v321 = vld [vmem:[%s269 + $0x60] sm:$0xff]
        %v322 = vld [vmem:[%s269 + $0x68] sm:$0xff]
        %v323 = vld [vmem:[%s269 + $0x70] sm:$0xff]
        %v324 = vld [vmem:[%s269 + $0x78] sm:$0xff]
        %v325 = vld [vmem:[%s291] sm:$0xff]
        %v326 = vld [vmem:[%s291 + $0x8] sm:$0xff]
        %v327 = vld [vmem:[%s291 + $0x10] sm:$0xff]
        %v328 = vld [vmem:[%s291 + $0x18] sm:$0xff]
        %v329 = vld [vmem:[%s291 + $0x20] sm:$0xff]
        %v330 = vld [vmem:[%s291 + $0x28] sm:$0xff]
        %v331 = vld [vmem:[%s291 + $0x30] sm:$0xff]
        %v332 = vld [vmem:[%s291 + $0x38] sm:$0xff]
        %v333 = vld [vmem:[%s291 + $0x40] sm:$0xff]
        %v334 = vld [vmem:[%s291 + $0x48] sm:$0xff]
        %v335 = vld [vmem:[%s291 + $0x50] sm:$0xff]
        %v336 = vld [vmem:[%s291 + $0x58] sm:$0xff]
        %v337 = vld [vmem:[%s291 + $0x60] sm:$0xff]
        %v338 = vld [vmem:[%s291 + $0x68] sm:$0xff]
        %v339 = vld [vmem:[%s291 + $0x70] sm:$0xff]
        %v340 = vld [vmem:[%s291 + $0x78] sm:$0xff]
        %s341 = sld [smem:[#allocation3]]
        %v342 = vlaneseq
        %v343 = vand.u32 %v342, 127
        %344 = vset.pattern.permute.xlu0 0
        %345 = vperm.xlu0 %344, %v325
        %v346 = vpop.permute.xlu0 %345
        %347 = vset.pattern.permute.xlu0 0
        %348 = vperm.xlu0 %347, %v326
        %v349 = vpop.permute.xlu0 %348
        %350 = vset.pattern.permute.xlu0 0
        %351 = vperm.xlu0 %350, %v327
        %v352 = vpop.permute.xlu0 %351
        %353 = vset.pattern.permute.xlu0 0
        %354 = vperm.xlu0 %353, %v328
        %v355 = vpop.permute.xlu0 %354
        %356 = vset.pattern.permute.xlu0 0
        %357 = vperm.xlu0 %356, %v329
        %v358 = vpop.permute.xlu0 %357
        %359 = vset.pattern.permute.xlu0 0
        %360 = vperm.xlu0 %359, %v330
        %v361 = vpop.permute.xlu0 %360
        %362 = vset.pattern.permute.xlu0 0
        %363 = vperm.xlu0 %362, %v331
        %v364 = vpop.permute.xlu0 %363
        %365 = vset.pattern.permute.xlu0 0
        %366 = vperm.xlu0 %365, %v332
        %v367 = vpop.permute.xlu0 %366
        %368 = vset.pattern.permute.xlu0 0
        %369 = vperm.xlu0 %368, %v333
        %v370 = vpop.permute.xlu0 %369
        %371 = vset.pattern.permute.xlu0 0
        %372 = vperm.xlu0 %371, %v334
        %v373 = vpop.permute.xlu0 %372
        %374 = vset.pattern.permute.xlu0 0
        %375 = vperm.xlu0 %374, %v335
        %v376 = vpop.permute.xlu0 %375
        %377 = vset.pattern.permute.xlu0 0
        %378 = vperm.xlu0 %377, %v336
        %v379 = vpop.permute.xlu0 %378
        %380 = vset.pattern.permute.xlu0 0
        %381 = vperm.xlu0 %380, %v337
        %v382 = vpop.permute.xlu0 %381
        %383 = vset.pattern.permute.xlu0 0
        %384 = vperm.xlu0 %383, %v338
        %v385 = vpop.permute.xlu0 %384
        %386 = vset.pattern.permute.xlu0 0
        %387 = vperm.xlu0 %386, %v339
        %v388 = vpop.permute.xlu0 %387
        %389 = vset.pattern.permute.xlu0 0
        %390 = vperm.xlu0 %389, %v340
        %v391 = vpop.permute.xlu0 %390
        %vm392 = vcmp.eq.s32.totalorder %v343, %v346
        %vm393 = vcmp.eq.s32.totalorder %v343, %v349
        %vm394 = vcmp.eq.s32.totalorder %v343, %v352
        %vm395 = vcmp.eq.s32.totalorder %v343, %v355
        %vm396 = vcmp.eq.s32.totalorder %v343, %v358
        %vm397 = vcmp.eq.s32.totalorder %v343, %v361
        %vm398 = vcmp.eq.s32.totalorder %v343, %v364
        %vm399 = vcmp.eq.s32.totalorder %v343, %v367
        %vm400 = vcmp.eq.s32.totalorder %v343, %v370
        %vm401 = vcmp.eq.s32.totalorder %v343, %v373
        %vm402 = vcmp.eq.s32.totalorder %v343, %v376
        %vm403 = vcmp.eq.s32.totalorder %v343, %v379
        %vm404 = vcmp.eq.s32.totalorder %v343, %v382
        %vm405 = vcmp.eq.s32.totalorder %v343, %v385
        %vm406 = vcmp.eq.s32.totalorder %v343, %v388
        %vm407 = vcmp.eq.s32.totalorder %v343, %v391
        %v408 = vsel %vm392, %v309, 0.0
        %v409 = vsel %vm393, %v310, 0.0
        %v410 = vsel %vm394, %v311, 0.0
        %v411 = vsel %vm395, %v312, 0.0
        %v412 = vsel %vm396, %v313, 0.0
        %v413 = vsel %vm397, %v314, 0.0
        %v414 = vsel %vm398, %v315, 0.0
        %v415 = vsel %vm399, %v316, 0.0
        %v416 = vsel %vm400, %v317, 0.0
        %v417 = vsel %vm401, %v318, 0.0
        %v418 = vsel %vm402, %v319, 0.0
        %v419 = vsel %vm403, %v320, 0.0
        %v420 = vsel %vm404, %v321, 0.0
        %v421 = vsel %vm405, %v322, 0.0
        %v422 = vsel %vm406, %v323, 0.0
        %v423 = vsel %vm407, %v324, 0.0
        %vm424 = vcmask 80896
        %v425 = vsel %vm424, %v408, 0.0
        %426 = vadd.xlane.f32.xlu0 %v425
        %v427 = vpop.xlane.xlu0 %426
        %v428 = vsel %vm424, %v409, 0.0
        %429 = vadd.xlane.f32.xlu0 %v428
        %v430 = vpop.xlane.xlu0 %429
        %v431 = vsel %vm424, %v410, 0.0
        %432 = vadd.xlane.f32.xlu0 %v431
        %v433 = vpop.xlane.xlu0 %432
        %v434 = vsel %vm424, %v411, 0.0
        %435 = vadd.xlane.f32.xlu0 %v434
        %v436 = vpop.xlane.xlu0 %435
        %v437 = vsel %vm424, %v412, 0.0
        %438 = vadd.xlane.f32.xlu0 %v437
        %v439 = vpop.xlane.xlu0 %438
        %v440 = vsel %vm424, %v413, 0.0
        %441 = vadd.xlane.f32.xlu0 %v440
        %v442 = vpop.xlane.xlu0 %441
        %v443 = vsel %vm424, %v414, 0.0
        %444 = vadd.xlane.f32.xlu0 %v443
        %v445 = vpop.xlane.xlu0 %444
        %v446 = vsel %vm424, %v415, 0.0
        %447 = vadd.xlane.f32.xlu0 %v446
        %v448 = vpop.xlane.xlu0 %447
        %v449 = vsel %vm424, %v416, 0.0
        %450 = vadd.xlane.f32.xlu0 %v449
        %v451 = vpop.xlane.xlu0 %450
        %v452 = vsel %vm424, %v417, 0.0
        %453 = vadd.xlane.f32.xlu0 %v452
        %v454 = vpop.xlane.xlu0 %453
        %v455 = vsel %vm424, %v418, 0.0
        %456 = vadd.xlane.f32.xlu0 %v455
        %v457 = vpop.xlane.xlu0 %456
        %v458 = vsel %vm424, %v419, 0.0
        %459 = vadd.xlane.f32.xlu0 %v458
        %v460 = vpop.xlane.xlu0 %459
        %v461 = vsel %vm424, %v420, 0.0
        %462 = vadd.xlane.f32.xlu0 %v461
        %v463 = vpop.xlane.xlu0 %462
        %v464 = vsel %vm424, %v421, 0.0
        %465 = vadd.xlane.f32.xlu0 %v464
        %v466 = vpop.xlane.xlu0 %465
        %v467 = vsel %vm424, %v422, 0.0
        %468 = vadd.xlane.f32.xlu0 %v467
        %v469 = vpop.xlane.xlu0 %468
        %v470 = vsel %vm424, %v423, 0.0
        %471 = vadd.xlane.f32.xlu0 %v470
        %v472 = vpop.xlane.xlu0 %471
        %v473 = vsub.f32 %v309, %v427
        %v474 = vsub.f32 %v310, %v430
        %v475 = vsub.f32 %v311, %v433
        %v476 = vsub.f32 %v312, %v436
        %v477 = vsub.f32 %v313, %v439
        %v478 = vsub.f32 %v314, %v442
        %v479 = vsub.f32 %v315, %v445
        %v480 = vsub.f32 %v316, %v448
        %v481 = vsub.f32 %v317, %v451
        %v482 = vsub.f32 %v318, %v454
        %v483 = vsub.f32 %v319, %v457
        %v484 = vsub.f32 %v320, %v460
        %v485 = vsub.f32 %v321, %v463
        %v486 = vsub.f32 %v322, %v466
        %v487 = vsub.f32 %v323, %v469
        %v488 = vsub.f32 %v324, %v472
        %v489 = vstv %s341
        %v490 = vadd.f32 %v473, %v489
        %v491 = vadd.f32 %v474, %v489
        %v492 = vadd.f32 %v475, %v489
        %v493 = vadd.f32 %v476, %v489
        %v494 = vadd.f32 %v477, %v489
        %v495 = vadd.f32 %v478, %v489
        %v496 = vadd.f32 %v479, %v489
        %v497 = vadd.f32 %v480, %v489
        %v498 = vadd.f32 %v481, %v489
        %v499 = vadd.f32 %v482, %v489
        %v500 = vadd.f32 %v483, %v489
        %v501 = vadd.f32 %v484, %v489
        %v502 = vadd.f32 %v485, %v489
        %v503 = vadd.f32 %v486, %v489
        %v504 = vadd.f32 %v487, %v489
        %v505 = vadd.f32 %v488, %v489
        %v506 = vmax.f32 %v490, 0.0
        %v507 = vmax.f32 %v491, 0.0
        %v508 = vmax.f32 %v492, 0.0
        %v509 = vmax.f32 %v493, 0.0
        %v510 = vmax.f32 %v494, 0.0
        %v511 = vmax.f32 %v495, 0.0
        %v512 = vmax.f32 %v496, 0.0
        %v513 = vmax.f32 %v497, 0.0
        %v514 = vmax.f32 %v498, 0.0
        %v515 = vmax.f32 %v499, 0.0
        %v516 = vmax.f32 %v500, 0.0
        %v517 = vmax.f32 %v501, 0.0
        %v518 = vmax.f32 %v502, 0.0
        %v519 = vmax.f32 %v503, 0.0
        %v520 = vmax.f32 %v504, 0.0
        %v521 = vmax.f32 %v505, 0.0
        %v522 = vmul.f32 %v506, %v506
        %v523 = vmul.f32 %v507, %v507
        %v524 = vmul.f32 %v508, %v508
        %v525 = vmul.f32 %v509, %v509
        %v526 = vmul.f32 %v510, %v510
        %v527 = vmul.f32 %v511, %v511
        %v528 = vmul.f32 %v512, %v512
        %v529 = vmul.f32 %v513, %v513
        %v530 = vmul.f32 %v514, %v514
        %v531 = vmul.f32 %v515, %v515
        %v532 = vmul.f32 %v516, %v516
        %v533 = vmul.f32 %v517, %v517
        %v534 = vmul.f32 %v518, %v518
        %v535 = vmul.f32 %v519, %v519
        %v536 = vmul.f32 %v520, %v520
        %v537 = vmul.f32 %v521, %v521
        %v538 = vlaneseq
        %v539 = vshrl.u32 %v538, 7
        %v540 = vadd.s32 %v539, 8
        %v541 = vadd.s32 %v539, 16
        %v542 = vadd.s32 %v539, 24
        %v543 = vadd.s32 %v539, 32
        %v544 = vadd.s32 %v539, 40
        %v545 = vadd.s32 %v539, 48
        %v546 = vadd.s32 %v539, 56
        %v547 = vadd.s32 %v539, 64
        %v548 = vadd.s32 %v539, 72
        %v549 = vadd.s32 %v539, 80
        %v550 = vadd.s32 %v539, 88
        %v551 = vadd.s32 %v539, 96
        %v552 = vadd.s32 %v539, 104
        %v553 = vadd.s32 %v539, 112
        %v554 = vadd.s32 %v539, 120
        %s555 = smul.u32 %s302, 128
        %v556 = vstv %s555
        %v557 = vadd.s32 %v556, %v539
        %v558 = vadd.s32 %v556, %v540
        %v559 = vadd.s32 %v556, %v541
        %v560 = vadd.s32 %v556, %v542
        %v561 = vadd.s32 %v556, %v543
        %v562 = vadd.s32 %v556, %v544
        %v563 = vadd.s32 %v556, %v545
        %v564 = vadd.s32 %v556, %v546
        %v565 = vadd.s32 %v556, %v547
        %v566 = vadd.s32 %v556, %v548
        %v567 = vadd.s32 %v556, %v549
        %v568 = vadd.s32 %v556, %v550
        %v569 = vadd.s32 %v556, %v551
        %v570 = vadd.s32 %v556, %v552
        %v571 = vadd.s32 %v556, %v553
        %v572 = vadd.s32 %v556, %v554
        %vm573 = vcmp.lt.s32.totalorder %v557, 300
        %vm574 = vcmp.lt.s32.totalorder %v558, 300
        %vm575 = vcmp.lt.s32.totalorder %v559, 300
        %vm576 = vcmp.lt.s32.totalorder %v560, 300
        %vm577 = vcmp.lt.s32.totalorder %v561, 300
        %vm578 = vcmp.lt.s32.totalorder %v562, 300
        %vm579 = vcmp.lt.s32.totalorder %v563, 300
        %vm580 = vcmp.lt.s32.totalorder %v564, 300
        %vm581 = vcmp.lt.s32.totalorder %v565, 300
        %vm582 = vcmp.lt.s32.totalorder %v566, 300
        %vm583 = vcmp.lt.s32.totalorder %v567, 300
        %vm584 = vcmp.lt.s32.totalorder %v568, 300
        %vm585 = vcmp.lt.s32.totalorder %v569, 300
        %vm586 = vcmp.lt.s32.totalorder %v570, 300
        %vm587 = vcmp.lt.s32.totalorder %v571, 300
        %vm588 = vcmp.lt.s32.totalorder %v572, 300
        %v589 = vsel %vm573, %v522, 0.0
        %v590 = vsel %vm574, %v523, 0.0
        %v591 = vsel %vm575, %v524, 0.0
        %v592 = vsel %vm576, %v525, 0.0
        %v593 = vsel %vm577, %v526, 0.0
        %v594 = vsel %vm578, %v527, 0.0
        %v595 = vsel %vm579, %v528, 0.0
        %v596 = vsel %vm580, %v529, 0.0
        %v597 = vsel %vm581, %v530, 0.0
        %v598 = vsel %vm582, %v531, 0.0
        %v599 = vsel %vm583, %v532, 0.0
        %v600 = vsel %vm584, %v533, 0.0
        %v601 = vsel %vm585, %v534, 0.0
        %v602 = vsel %vm586, %v535, 0.0
        %v603 = vsel %vm587, %v536, 0.0
        %v604 = vsel %vm588, %v537, 0.0
        %v605 = vsel %vm424, %v589, 0.0
        %v606 = vsel %vm424, %v590, 0.0
        %v607 = vadd.f32 %v605, %v606
        %v608 = vsel %vm424, %v591, 0.0
        %v609 = vadd.f32 %v607, %v608
        %v610 = vsel %vm424, %v592, 0.0
        %v611 = vadd.f32 %v609, %v610
        %v612 = vsel %vm424, %v593, 0.0
        %v613 = vadd.f32 %v611, %v612
        %v614 = vsel %vm424, %v594, 0.0
        %v615 = vadd.f32 %v613, %v614
        %v616 = vsel %vm424, %v595, 0.0
        %v617 = vadd.f32 %v615, %v616
        %v618 = vsel %vm424, %v596, 0.0
        %v619 = vadd.f32 %v617, %v618
        %v620 = vsel %vm424, %v597, 0.0
        %v621 = vadd.f32 %v619, %v620
        %v622 = vsel %vm424, %v598, 0.0
        %v623 = vadd.f32 %v621, %v622
        %v624 = vsel %vm424, %v599, 0.0
        %v625 = vadd.f32 %v623, %v624
        %v626 = vsel %vm424, %v600, 0.0
        %v627 = vadd.f32 %v625, %v626
        %v628 = vsel %vm424, %v601, 0.0
        %v629 = vadd.f32 %v627, %v628
        %v630 = vsel %vm424, %v602, 0.0
        %v631 = vadd.f32 %v629, %v630
        %v632 = vsel %vm424, %v603, 0.0
        %v633 = vadd.f32 %v631, %v632
        %v634 = vsel %vm424, %v604, 0.0
        %v635 = vadd.f32 %v633, %v634
        %v636 = vrot.slane %v635, 4
        %v637 = vadd.f32 %v635, %v636
        %v638 = vrot.slane %v637, 2
        %v639 = vadd.f32 %v637, %v638
        %v640 = vrot.slane %v639, 1
        %v641 = vadd.f32 %v639, %v640
        %v642 = vsel %vm424, %v641, 0.0
        %643 = vadd.xlane.f32.xlu0 %v642
        %v644 = vpop.xlane.xlu0 %643
        %s645 = ssub.s32 300, %s555
        %p646 = scmp.gt.s32.totalorder %s645, 0
        %s647 = scalar_select %p646, %s645, 0
        %p648 = scmp.lt.s32.totalorder %s647, 128
        %s649 = scalar_select %p648, %s647, 128
        %s650 = scvt.s32.f32 %s649
        %s651 = smax.f32 %s341, 0.0
        %s652 = smul.f32 %s651, %s651
        %v653 = vld [vmem:[#allocation2] sm:$0x1]
        %s654 = smul.f32 %s650, %s652
        %v655 = vstv %s654
        %v656 = vsub.f32 %v644, %v655
        %v657 = vadd.f32 %v653, %v656
        %vm658 = vcmask 0
        %659 = vst.msk [vmem:[#allocation2] sm:$0x1] %vm658, %v657
        %p660 = scmp.eq.s32.totalorder %s23, 1
        // Predicated region
        $region37: #{tpu_custom_call.1} parent=31 // pred_check
          %p661 = pneg %p660
        $region38: #{tpu_custom_call.1} parent=31 // pred_check_branch
          %663 = sbr.rel (%p661) target = $region40
        $region39: #{tpu_custom_call.1} parent=31 // pred_region
          %v664 = vld [vmem:[#allocation2] sm:$0x1]
          %v665 = vrcp.pop 300.0
          %v666 = vmul.f32 %v664, %v665
          %668 = vset.pattern.permute.xlu0 0
          %669 = vperm.xlu0 %668, %v666
          %v670 = vpop.permute.xlu0 %669
          %v672 = vlaneseq
          %v673 = vshrl.u32 %v672, 7
          %v674 = vsub.s32 0, %v673
          %v675 = vrot.slane %v670, %v674
          %676 = vst [vmem:[%s256] sm:$0x1] %v675
        $region40: #{tpu_custom_call.1} parent=31 // pred_fallthru
          _
        %s677 = sand.u32 %s127, 1
        %s678 = scalar_lea.sflag [#allocation5], %s677
        %s679 = sand.u32 %s127, 1
        %s680 = scalar_lea.vmem [#allocation4], %s679
        // Predicated region
        $region41: #{tpu_custom_call.1} parent=31 // pred_check
          %p681 = pneg %p137
        $region42: #{tpu_custom_call.1} parent=31 // pred_check_branch
          %683 = sbr.rel (%p681) target = $region44
        $region43: #{tpu_custom_call.1} parent=31 // pred_region
          %s685 = ssub.s32 16, 16
          %686 = vsyncadd %s678, %s685
          %s687 = smul.addr %s22, 16
          %s688 = scalar_lea.hbm %s3, %s687
          %s690 = sshll.u32 %s680, 4
          %s691 = int_to_ptr.vmem [resolvable:$true] %s690
          %693 = dma.vmem_to_hbm [thread:$0]  %s691, 16, %s688, %s678
        $region44: #{tpu_custom_call.1} parent=31 // pred_fallthru
          _
      $region32: #{tpu_custom_call.1} parent=5 // pred_fallthru
        _
      %p694 = scmp.le.s32.totalorder 2, %s13
      // Predicated region
      $region45: #{tpu_custom_call.1} parent=5 // pred_check
        %p695 = pneg %p694
      $region46: #{tpu_custom_call.1} parent=5 // pred_check_branch
        %697 = sbr.rel (%p695) target = $region48
      $region47: #{tpu_custom_call.1} parent=5 // pred_region
        %s698 = ssub.s32 %s13, 2
        // Predicated region
        $region49: #{tpu_custom_call.1} parent=47 // pred_check
          %p699 = pneg %p143
        $region50: #{tpu_custom_call.1} parent=47 // pred_check_branch
          %701 = sbr.rel (%p699) target = $region52
        $region51: #{tpu_custom_call.1} parent=47 // pred_region
          %s702 = sand.u32 %s128, 1
          %s703 = scalar_lea.sflag [#allocation5], %s702
          %s704 = sand.u32 %s128, 1
          %s705 = scalar_lea.vmem [#allocation4], %s704
          %706 = dma.done %s703, 16
        $region52: #{tpu_custom_call.1} parent=47 // pred_fallthru
          _
      $region48: #{tpu_custom_call.1} parent=5 // pred_fallthru
        _
    $region6: #{tpu_custom_call.1} parent=1 // loop_footer
      %s17 = sadd.s32 1, %s13
    $region7: #{tpu_custom_call.1} parent=1 // loop_footer_branch
      %12 = sbr.rel target = $region3
    $region8: #{tpu_custom_call.1} parent=1 // loop_exit
      _
    %707 = vsyncpa [#allocation5], 1
    %s708 = scalar_lea.sflag [#allocation5], 1
    %709 = vsyncpa %s708, 1

</llo_original>
